<compile_context>
chip_gen: v7x
topology: tpu7x:2x2x1
jax: 0.10.0
libtpu: 0.0.40
codegen_flags: <defaults>
</compile_context>

<pallas_src>
import functools

import jax
import jax.numpy as jnp
from jax.experimental import pallas as pl
from jax.experimental.pallas import tpu as pltpu


def _attn_dropout_kernel(q_ref, k_ref, v_ref, rand_ref, o_ref, *, dropout_p):
    # q: (G, Sq, D), k/v: (G, Sk, D), rand: (G, Sq, Sk) uniform [0, 1)
    q = q_ref[...]
    k = k_ref[...]
    v = v_ref[...]

    # qk = q @ k^T with the transpose folded into the contraction
    # (batch over heads, contract D). bf16 MXU inputs, f32 accumulation.
    s = jax.lax.dot_general(
        q.astype(jnp.bfloat16), k.astype(jnp.bfloat16),
        dimension_numbers=(((2,), (2,)), ((0,), (0,))),
        preferred_element_type=jnp.float32)               # (G, Sq, Sk)

    # inv_scale_factor = sqrt(128/128) == 1.0 -> the divide is a no-op.

    # Numerically stable softmax over the key axis (kept in f32).
    s_max = jnp.max(s, axis=-1, keepdims=True)
    e = jnp.exp(s - s_max)
    denom = jnp.sum(e, axis=-1, keepdims=True)            # (G, Sq, 1)

    # Fold softmax normalization, the .div(dropout_p), and the 1/(1-p)
    # dropout survivor scaling into a single per-row factor.
    combined = 1.0 / (dropout_p * (1.0 - dropout_p))
    row_scale = jnp.float32(combined) / denom             # tiny (G, Sq, 1) divide

    keep = rand_ref[...] >= jnp.float32(dropout_p)        # drop with prob p
    probs = jnp.where(keep, e * row_scale, 0.0)           # (G, Sq, Sk)

    # probs @ v, again bf16 into the MXU with f32 accumulation.
    out = jax.lax.dot_general(
        probs.astype(jnp.bfloat16), v.astype(jnp.bfloat16),
        dimension_numbers=(((2,), (1,)), ((0,), (0,))),
        preferred_element_type=jnp.float32)               # (G, Sq, D)
    o_ref[...] = out.astype(o_ref.dtype)


def attention_with_dropout(query, key, value, *, dropout_p=0.5, seed=0,
                           heads_per_step=None):
    """query: [B,H,Sq,D]; key/value: [B,H,Sk,D] -> [B,H,Sq,D] (float32)."""
    assert 0.0 < dropout_p < 1.0, "dropout_p must be in (0, 1)"
    B, H, Sq, D = query.shape
    _, _, Sk, _ = key.shape
    BH = B * H

    qf = query.reshape(BH, Sq, D)
    kf = key.reshape(BH, Sk, D)
    vf = value.reshape(BH, Sk, D)

    # Dropout mask source: uniform randoms generated once (portable; no
    # in-kernel TPU PRNG seeding per head).
    rand = jax.random.uniform(
        jax.random.PRNGKey(seed), (BH, Sq, Sk), dtype=jnp.float32)

    # Batch G heads per grid step: largest divisor of B*H that is <= 16.
    if heads_per_step is None:
        heads_per_step = 1
        for g in range(1, min(BH, 16) + 1):
            if BH % g == 0:
                heads_per_step = g
    G = heads_per_step
    assert BH % G == 0
    grid = (BH // G,)

    kernel = functools.partial(_attn_dropout_kernel, dropout_p=dropout_p)

    out = pl.pallas_call(
        kernel,
        out_shape=jax.ShapeDtypeStruct((BH, Sq, D), jnp.float32),
        grid=grid,
        in_specs=[
            pl.BlockSpec((G, Sq, D), lambda i: (i, 0, 0)),
            pl.BlockSpec((G, Sk, D), lambda i: (i, 0, 0)),
            pl.BlockSpec((G, Sk, D), lambda i: (i, 0, 0)),
            pl.BlockSpec((G, Sq, Sk), lambda i: (i, 0, 0)),
        ],
        out_specs=pl.BlockSpec((G, Sq, D), lambda i: (i, 0, 0)),
        compiler_params=pltpu.CompilerParams(
            dimension_semantics=("parallel",)),
    )(qf, kf, vf, rand)

    return out.reshape(B, H, Sq, D)


if __name__ == "__main__":
    # Small, mutually-consistent shapes in the spirit of the module:
    # B=2, H=2 heads, Sq=8 query positions, Sk=128 key positions, D=128.
    B, H, Sq, Sk, D = 2, 2, 8, 128, 128
    root = jax.random.PRNGKey(0)
    kq, kk, kv = jax.random.split(root, 3)
    # torch.rand -> uniform [0, 1)
    query = jax.random.uniform(kq, (B, H, Sq, D), dtype=jnp.float32)
    key = jax.random.uniform(kk, (B, H, Sk, D), dtype=jnp.float32)
    value = jax.random.uniform(kv, (B, H, Sk, D), dtype=jnp.float32)

    out = attention_with_dropout(query, key, value, dropout_p=0.5, seed=0)
    out = jax.block_until_ready(out)

    assert out.shape == (B, H, Sq, D), out.shape
    assert bool(jnp.isfinite(out).all())
    print("KERNEL_OK")
</pallas_src>

<mosaic_0001>
module attributes {stable_mosaic.version = 11 : i64} {
  func.func @_attn_dropout_kernel(%arg0: i32, %arg1: memref<4x8x128xf32, #tpu.memory_space<vmem>>, %arg2: memref<4x128x128xf32, #tpu.memory_space<vmem>>, %arg3: memref<4x128x128xf32, #tpu.memory_space<vmem>>, %arg4: memref<4x8x128xf32, #tpu.memory_space<vmem>>, %arg5: memref<4x8x128xf32, #tpu.memory_space<vmem>>) attributes {dimension_semantics = [#tpu.dimension_semantics<parallel>], iteration_bounds = array<i64: 1>, scalar_prefetch = 0 : i64, scratch_operands = 0 : i64, tpu.core_type = #tpu.core_type<tc>, window_params = [{transform_indices = @transform_0, window_bounds = array<i64: 4, 8, 128>}, {transform_indices = @transform_1, window_bounds = array<i64: 4, 128, 128>}, {transform_indices = @transform_2, window_bounds = array<i64: 4, 128, 128>}, {transform_indices = @transform_3, window_bounds = array<i64: 4, 8, 128>}, {transform_indices = @transform_4, window_bounds = array<i64: 4, 8, 128>}]} {
    %c0 = arith.constant 0 : index
    %c0_0 = arith.constant 0 : index
    %c0_1 = arith.constant 0 : index
    %0 = vector.load %arg1[%c0, %c0_0, %c0_1] : memref<4x8x128xf32, #tpu.memory_space<vmem>>, vector<4x8x128xf32>
    %c0_2 = arith.constant 0 : index
    %c0_3 = arith.constant 0 : index
    %c0_4 = arith.constant 0 : index
    %1 = vector.load %arg2[%c0_2, %c0_3, %c0_4] : memref<4x128x128xf32, #tpu.memory_space<vmem>>, vector<4x128x128xf32>
    %c0_5 = arith.constant 0 : index
    %c0_6 = arith.constant 0 : index
    %c0_7 = arith.constant 0 : index
    %2 = vector.load %arg3[%c0_5, %c0_6, %c0_7] : memref<4x128x128xf32, #tpu.memory_space<vmem>>, vector<4x128x128xf32>
    %3 = arith.truncf %0 : vector<4x8x128xf32> to vector<4x8x128xbf16>
    %4 = arith.truncf %1 : vector<4x128x128xf32> to vector<4x128x128xbf16>
    %cst = arith.constant dense<0.000000e+00> : vector<4x8x128xf32>
    %5 = tpu.matmul %3, %4, %cst {dimension_numbers = #tpu.dot_dimension_numbers<[2], [2], [1], [1], [0, 0, 0, 1, 1, 1], [0], [0]>} : vector<4x8x128xbf16>, vector<4x128x128xbf16>, vector<4x8x128xf32> -> vector<4x8x128xf32>
    %cst_8 = arith.constant dense<0xFF800000> : vector<4x8xf32>
    %6 = vector.multi_reduction <maximumf>, %5, %cst_8 [2] : vector<4x8x128xf32> to vector<4x8xf32>
    %7 = vector.shape_cast %6 : vector<4x8xf32> to vector<4x8x1xf32>
    %8 = vector.broadcast %7 : vector<4x8x1xf32> to vector<4x8x128xf32>
    %9 = arith.subf %5, %8 : vector<4x8x128xf32>
    %10 = math.exp %9 : vector<4x8x128xf32>
    %cst_9 = arith.constant dense<0.000000e+00> : vector<4x8xf32>
    %11 = vector.multi_reduction <add>, %10, %cst_9 [2] : vector<4x8x128xf32> to vector<4x8xf32>
    %12 = vector.shape_cast %11 : vector<4x8xf32> to vector<4x8x1xf32>
    %cst_10 = arith.constant 4.000000e+00 : f32
    %13 = vector.broadcast %cst_10 : f32 to vector<4x8x1xf32>
    %14 = arith.divf %13, %12 : vector<4x8x1xf32>
    %c0_11 = arith.constant 0 : index
    %c0_12 = arith.constant 0 : index
    %c0_13 = arith.constant 0 : index
    %15 = vector.load %arg4[%c0_11, %c0_12, %c0_13] : memref<4x8x128xf32, #tpu.memory_space<vmem>>, vector<4x8x128xf32>
    %cst_14 = arith.constant 5.000000e-01 : f32
    %16 = vector.broadcast %cst_14 : f32 to vector<4x8x128xf32>
    %17 = arith.cmpf oge, %15, %16 : vector<4x8x128xf32>
    %18 = vector.broadcast %14 : vector<4x8x1xf32> to vector<4x8x128xf32>
    %19 = arith.mulf %10, %18 : vector<4x8x128xf32>
    %cst_15 = arith.constant 0.000000e+00 : f32
    %20 = vector.broadcast %cst_15 : f32 to vector<4x8x128xf32>
    %21 = arith.select %17, %19, %20 : vector<4x8x128xi1>, vector<4x8x128xf32>
    %22 = arith.truncf %21 : vector<4x8x128xf32> to vector<4x8x128xbf16>
    %23 = arith.truncf %2 : vector<4x128x128xf32> to vector<4x128x128xbf16>
    %cst_16 = arith.constant dense<0.000000e+00> : vector<4x8x128xf32>
    %24 = tpu.matmul %22, %23, %cst_16 {dimension_numbers = #tpu.dot_dimension_numbers<[2], [1], [1], [2], [0, 0, 0, 1, 1, 2], [0], [0]>} : vector<4x8x128xbf16>, vector<4x128x128xbf16>, vector<4x8x128xf32> -> vector<4x8x128xf32>
    %c0_17 = arith.constant 0 : index
    %c0_18 = arith.constant 0 : index
    %c0_19 = arith.constant 0 : index
    %25 = vector.load %arg5[%c0_17, %c0_18, %c0_19] : memref<4x8x128xf32, #tpu.memory_space<vmem>>, vector<4x8x128xf32>
    tpu.vector_store %arg5[%c0_17, %c0_18, %c0_19], %24 {strides = array<i32>} : memref<4x8x128xf32, #tpu.memory_space<vmem>>, vector<4x8x128xf32>,
    return
  }
  func.func @transform_0(%arg0: i32) -> (i32, i32, i32) {
    %c0_i32 = arith.constant 0 : i32
    %c0_i32_0 = arith.constant 0 : i32
    %c0_i32_1 = arith.constant 0 : i32
    return %arg0, %c0_i32, %c0_i32_0 : i32, i32, i32
  }
  func.func @transform_1(%arg0: i32) -> (i32, i32, i32) {
    %c0_i32 = arith.constant 0 : i32
    %c0_i32_0 = arith.constant 0 : i32
    %c0_i32_1 = arith.constant 0 : i32
    return %arg0, %c0_i32, %c0_i32_0 : i32, i32, i32
  }
  func.func @transform_2(%arg0: i32) -> (i32, i32, i32) {
    %c0_i32 = arith.constant 0 : i32
    %c0_i32_0 = arith.constant 0 : i32
    %c0_i32_1 = arith.constant 0 : i32
    return %arg0, %c0_i32, %c0_i32_0 : i32, i32, i32
  }
  func.func @transform_3(%arg0: i32) -> (i32, i32, i32) {
    %c0_i32 = arith.constant 0 : i32
    %c0_i32_0 = arith.constant 0 : i32
    %c0_i32_1 = arith.constant 0 : i32
    return %arg0, %c0_i32, %c0_i32_0 : i32, i32, i32
  }
  func.func @transform_4(%arg0: i32) -> (i32, i32, i32) {
    %c0_i32 = arith.constant 0 : i32
    %c0_i32_0 = arith.constant 0 : i32
    %c0_i32_1 = arith.constant 0 : i32
    return %arg0, %c0_i32, %c0_i32_0 : i32, i32, i32
  }
}

</mosaic_0001>

<llo_original>
// kernel: tpu_custom_call.1
$region0: #{tpu_custom_call.1}
  #allocation0 [shape = 'u32[]', space=smem, size = 0x4, offset = 0x4, fixed_abs, tag = 'smem constant byte address 0x4 - core index']
  #allocation1 [shape = 'u32[144,128]{1,0:T(1,128)}', space=vmem, size = 0x12000, scoped, tag = 'internal scratch']
  %s0 = inlined_call_operand.hbm [shape: f32[4,8,128], index: 0, kind: input, shape index: {}]
  %s1 = inlined_call_operand.hbm [shape: f32[4,128,128], index: 1, kind: input, shape index: {}]
  %s2 = inlined_call_operand.hbm [shape: f32[4,128,128], index: 2, kind: input, shape index: {}]
  %s3 = inlined_call_operand.hbm [shape: f32[4,8,128], index: 3, kind: input, shape index: {}]
  %s4 = inlined_call_operand.hbm [shape: f32[4,8,128], index: 4, kind: output, shape index: {}]
  %s5 = sld [smem:[#allocation0]]
  $region42: #{tpu_custom_call.1} parent=0
    _
  %s7 = ssub.s32 1, %s5
  %s8 = scalar_select 0, %s7, %s5
  $region1: #{tpu_custom_call.1} parent=0
    #allocation2 [shape = 'u8[16384]{0}', space=vmem, size = 0x4000, scoped, tag = 'input window, operand 0, single buffered']
    #allocation3 [shape = 's32[1]{0}', space=sflag, size = 0x4, scoped, tag = 'scoped memory for tpu_custom_call.1']
    #allocation4 [shape = 's32[1]{0}', space=sflag, size = 0x4, scoped, tag = 'scoped memory for tpu_custom_call.1']
    #allocation5 [shape = 'u8[262144]{0}', space=vmem, size = 0x40000, scoped, tag = 'input window, operand 1, single buffered']
    #allocation6 [shape = 's32[1]{0}', space=sflag, size = 0x4, scoped, tag = 'scoped memory for tpu_custom_call.1']
    #allocation7 [shape = 'u8[262144]{0}', space=vmem, size = 0x40000, scoped, tag = 'input window, operand 2, single buffered']
    #allocation8 [shape = 'u8[16384]{0}', space=vmem, size = 0x4000, scoped, tag = 'input window, operand 3, single buffered']
    #allocation9 [shape = 's32[1]{0}', space=sflag, size = 0x4, scoped, tag = 'scoped memory for tpu_custom_call.1']
    #allocation10 [shape = 'u8[16384]{0}', space=vmem, size = 0x4000, scoped, tag = 'output window, operand 0, single buffered']
    %9 = vsyncpa [#allocation3], 0
    %10 = vsyncpa [#allocation6], 0
    %11 = vsyncpa [#allocation9], 0
    %12 = vsyncpa [#allocation4], 0
    // Predicated region
    $region2: #{tpu_custom_call.1} parent=1 // pred_check
      _
    $region3: #{tpu_custom_call.1} parent=1 // pred_check_branch
      %14 = sbr.rel (0) target = $region5
    $region4: #{tpu_custom_call.1} parent=1 // pred_region
      %s16 = ssub.s32 512, 512
      %17 = vsyncadd [#allocation3], %s16
      %s18 = sshll.u32 [#allocation2], 4
      %s19 = int_to_ptr.vmem [resolvable:$true] %s18
      %24 = dma.hbm_to_vmem [thread:$0]  %s0, 512, %s19, [#allocation3], 128, 128, 8
    $region5: #{tpu_custom_call.1} parent=1 // pred_fallthru
      _
    // Predicated region
    $region6: #{tpu_custom_call.1} parent=1 // pred_check
      _
    $region7: #{tpu_custom_call.1} parent=1 // pred_check_branch
      %26 = sbr.rel (0) target = $region9
    $region8: #{tpu_custom_call.1} parent=1 // pred_region
      %s28 = ssub.s32 8192, 8192
      %29 = vsyncadd [#allocation6], %s28
      %s30 = sshll.u32 [#allocation5], 4
      %s31 = int_to_ptr.vmem [resolvable:$true] %s30
      %36 = dma.hbm_to_vmem [thread:$0]  %s1, 8192, %s31, [#allocation6], 128, 128, 8
    $region9: #{tpu_custom_call.1} parent=1 // pred_fallthru
      _
    // Predicated region
    $region10: #{tpu_custom_call.1} parent=1 // pred_check
      _
    $region11: #{tpu_custom_call.1} parent=1 // pred_check_branch
      %38 = sbr.rel (0) target = $region13
    $region12: #{tpu_custom_call.1} parent=1 // pred_region
      %s40 = ssub.s32 8192, 8192
      %41 = vsyncadd [#allocation6], %s40
      %s42 = sshll.u32 [#allocation7], 4
      %s43 = int_to_ptr.vmem [resolvable:$true] %s42
      %48 = dma.hbm_to_vmem [thread:$0]  %s2, 8192, %s43, [#allocation6], 128, 128, 8
    $region13: #{tpu_custom_call.1} parent=1 // pred_fallthru
      _
    // Predicated region
    $region14: #{tpu_custom_call.1} parent=1 // pred_check
      _
    $region15: #{tpu_custom_call.1} parent=1 // pred_check_branch
      %50 = sbr.rel (0) target = $region17
    $region16: #{tpu_custom_call.1} parent=1 // pred_region
      %s52 = ssub.s32 512, 512
      %53 = vsyncadd [#allocation9], %s52
      %s54 = sshll.u32 [#allocation8], 4
      %s55 = int_to_ptr.vmem [resolvable:$true] %s54
      %60 = dma.hbm_to_vmem [thread:$0]  %s3, 512, %s55, [#allocation9], 128, 128, 8
    $region17: #{tpu_custom_call.1} parent=1 // pred_fallthru
      _
    // Predicated region
    $region18: #{tpu_custom_call.1} parent=1 // pred_check
      _
    $region19: #{tpu_custom_call.1} parent=1 // pred_check_branch
      %62 = sbr.rel (0) target = $region21
    $region20: #{tpu_custom_call.1} parent=1 // pred_region
      %63 = dma.done [#allocation3], 512
    $region21: #{tpu_custom_call.1} parent=1 // pred_fallthru
      _
    // Predicated region
    $region22: #{tpu_custom_call.1} parent=1 // pred_check
      _
    $region23: #{tpu_custom_call.1} parent=1 // pred_check_branch
      %65 = sbr.rel (0) target = $region25
    $region24: #{tpu_custom_call.1} parent=1 // pred_region
      %66 = dma.done [#allocation6], 8192
    $region25: #{tpu_custom_call.1} parent=1 // pred_fallthru
      _
    // Predicated region
    $region26: #{tpu_custom_call.1} parent=1 // pred_check
      _
    $region27: #{tpu_custom_call.1} parent=1 // pred_check_branch
      %68 = sbr.rel (0) target = $region29
    $region28: #{tpu_custom_call.1} parent=1 // pred_region
      %69 = dma.done [#allocation6], 8192
    $region29: #{tpu_custom_call.1} parent=1 // pred_fallthru
      _
    // Predicated region
    $region30: #{tpu_custom_call.1} parent=1 // pred_check
      _
    $region31: #{tpu_custom_call.1} parent=1 // pred_check_branch
      %71 = sbr.rel (0) target = $region33
    $region32: #{tpu_custom_call.1} parent=1 // pred_region
      %72 = dma.done [#allocation9], 512
    $region33: #{tpu_custom_call.1} parent=1 // pred_fallthru
      _
    %v74 = vld [vmem:[#allocation2] sm:$0xff]
    %v75 = vld [vmem:[#allocation2 + $0x8] sm:$0xff]
    %v76 = vld [vmem:[#allocation2 + $0x10] sm:$0xff]
    %v77 = vld [vmem:[#allocation2 + $0x18] sm:$0xff]
    %v78 = vld [vmem:[#allocation5] sm:$0xff]
    %v79 = vld [vmem:[#allocation5 + $0x8] sm:$0xff]
    %v80 = vld [vmem:[#allocation5 + $0x10] sm:$0xff]
    %v81 = vld [vmem:[#allocation5 + $0x18] sm:$0xff]
    %v82 = vld [vmem:[#allocation5 + $0x20] sm:$0xff]
    %v83 = vld [vmem:[#allocation5 + $0x28] sm:$0xff]
    %v84 = vld [vmem:[#allocation5 + $0x30] sm:$0xff]
    %v85 = vld [vmem:[#allocation5 + $0x38] sm:$0xff]
    %v86 = vld [vmem:[#allocation5 + $0x40] sm:$0xff]
    %v87 = vld [vmem:[#allocation5 + $0x48] sm:$0xff]
    %v88 = vld [vmem:[#allocation5 + $0x50] sm:$0xff]
    %v89 = vld [vmem:[#allocation5 + $0x58] sm:$0xff]
    %v90 = vld [vmem:[#allocation5 + $0x60] sm:$0xff]
    %v91 = vld [vmem:[#allocation5 + $0x68] sm:$0xff]
    %v92 = vld [vmem:[#allocation5 + $0x70] sm:$0xff]
    %v93 = vld [vmem:[#allocation5 + $0x78] sm:$0xff]
    %v94 = vld [vmem:[#allocation5 + $0x80] sm:$0xff]
    %v95 = vld [vmem:[#allocation5 + $0x88] sm:$0xff]
    %v96 = vld [vmem:[#allocation5 + $0x90] sm:$0xff]
    %v97 = vld [vmem:[#allocation5 + $0x98] sm:$0xff]
    %v98 = vld [vmem:[#allocation5 + $0xa0] sm:$0xff]
    %v99 = vld [vmem:[#allocation5 + $0xa8] sm:$0xff]
    %v100 = vld [vmem:[#allocation5 + $0xb0] sm:$0xff]
    %v101 = vld [vmem:[#allocation5 + $0xb8] sm:$0xff]
    %v102 = vld [vmem:[#allocation5 + $0xc0] sm:$0xff]
    %v103 = vld [vmem:[#allocation5 + $0xc8] sm:$0xff]
    %v104 = vld [vmem:[#allocation5 + $0xd0] sm:$0xff]
    %v105 = vld [vmem:[#allocation5 + $0xd8] sm:$0xff]
    %v106 = vld [vmem:[#allocation5 + $0xe0] sm:$0xff]
    %v107 = vld [vmem:[#allocation5 + $0xe8] sm:$0xff]
    %v108 = vld [vmem:[#allocation5 + $0xf0] sm:$0xff]
    %v109 = vld [vmem:[#allocation5 + $0xf8] sm:$0xff]
    %v110 = vld [vmem:[#allocation5 + $0x100] sm:$0xff]
    %v111 = vld [vmem:[#allocation5 + $0x108] sm:$0xff]
    %v112 = vld [vmem:[#allocation5 + $0x110] sm:$0xff]
    %v113 = vld [vmem:[#allocation5 + $0x118] sm:$0xff]
    %v114 = vld [vmem:[#allocation5 + $0x120] sm:$0xff]
    %v115 = vld [vmem:[#allocation5 + $0x128] sm:$0xff]
    %v116 = vld [vmem:[#allocation5 + $0x130] sm:$0xff]
    %v117 = vld [vmem:[#allocation5 + $0x138] sm:$0xff]
    %v118 = vld [vmem:[#allocation5 + $0x140] sm:$0xff]
    %v119 = vld [vmem:[#allocation5 + $0x148] sm:$0xff]
    %v120 = vld [vmem:[#allocation5 + $0x150] sm:$0xff]
    %v121 = vld [vmem:[#allocation5 + $0x158] sm:$0xff]
    %v122 = vld [vmem:[#allocation5 + $0x160] sm:$0xff]
    %v123 = vld [vmem:[#allocation5 + $0x168] sm:$0xff]
    %v124 = vld [vmem:[#allocation5 + $0x170] sm:$0xff]
    %v125 = vld [vmem:[#allocation5 + $0x178] sm:$0xff]
    %v126 = vld [vmem:[#allocation5 + $0x180] sm:$0xff]
    %v127 = vld [vmem:[#allocation5 + $0x188] sm:$0xff]
    %v128 = vld [vmem:[#allocation5 + $0x190] sm:$0xff]
    %v129 = vld [vmem:[#allocation5 + $0x198] sm:$0xff]
    %v130 = vld [vmem:[#allocation5 + $0x1a0] sm:$0xff]
    %v131 = vld [vmem:[#allocation5 + $0x1a8] sm:$0xff]
    %v132 = vld [vmem:[#allocation5 + $0x1b0] sm:$0xff]
    %v133 = vld [vmem:[#allocation5 + $0x1b8] sm:$0xff]
    %v134 = vld [vmem:[#allocation5 + $0x1c0] sm:$0xff]
    %v135 = vld [vmem:[#allocation5 + $0x1c8] sm:$0xff]
    %v136 = vld [vmem:[#allocation5 + $0x1d0] sm:$0xff]
    %v137 = vld [vmem:[#allocation5 + $0x1d8] sm:$0xff]
    %v138 = vld [vmem:[#allocation5 + $0x1e0] sm:$0xff]
    %v139 = vld [vmem:[#allocation5 + $0x1e8] sm:$0xff]
    %v140 = vld [vmem:[#allocation5 + $0x1f0] sm:$0xff]
    %v141 = vld [vmem:[#allocation5 + $0x1f8] sm:$0xff]
    %v142 = vld [vmem:[#allocation7] sm:$0xff]
    %v143 = vld [vmem:[#allocation7 + $0x8] sm:$0xff]
    %v144 = vld [vmem:[#allocation7 + $0x10] sm:$0xff]
    %v145 = vld [vmem:[#allocation7 + $0x18] sm:$0xff]
    %v146 = vld [vmem:[#allocation7 + $0x20] sm:$0xff]
    %v147 = vld [vmem:[#allocation7 + $0x28] sm:$0xff]
    %v148 = vld [vmem:[#allocation7 + $0x30] sm:$0xff]
    %v149 = vld [vmem:[#allocation7 + $0x38] sm:$0xff]
    %v150 = vld [vmem:[#allocation7 + $0x40] sm:$0xff]
    %v151 = vld [vmem:[#allocation7 + $0x48] sm:$0xff]
    %v152 = vld [vmem:[#allocation7 + $0x50] sm:$0xff]
    %v153 = vld [vmem:[#allocation7 + $0x58] sm:$0xff]
    %v154 = vld [vmem:[#allocation7 + $0x60] sm:$0xff]
    %v155 = vld [vmem:[#allocation7 + $0x68] sm:$0xff]
    %v156 = vld [vmem:[#allocation7 + $0x70] sm:$0xff]
    %v157 = vld [vmem:[#allocation7 + $0x78] sm:$0xff]
    %v158 = vld [vmem:[#allocation7 + $0x80] sm:$0xff]
    %v159 = vld [vmem:[#allocation7 + $0x88] sm:$0xff]
    %v160 = vld [vmem:[#allocation7 + $0x90] sm:$0xff]
    %v161 = vld [vmem:[#allocation7 + $0x98] sm:$0xff]
    %v162 = vld [vmem:[#allocation7 + $0xa0] sm:$0xff]
    %v163 = vld [vmem:[#allocation7 + $0xa8] sm:$0xff]
    %v164 = vld [vmem:[#allocation7 + $0xb0] sm:$0xff]
    %v165 = vld [vmem:[#allocation7 + $0xb8] sm:$0xff]
    %v166 = vld [vmem:[#allocation7 + $0xc0] sm:$0xff]
    %v167 = vld [vmem:[#allocation7 + $0xc8] sm:$0xff]
    %v168 = vld [vmem:[#allocation7 + $0xd0] sm:$0xff]
    %v169 = vld [vmem:[#allocation7 + $0xd8] sm:$0xff]
    %v170 = vld [vmem:[#allocation7 + $0xe0] sm:$0xff]
    %v171 = vld [vmem:[#allocation7 + $0xe8] sm:$0xff]
    %v172 = vld [vmem:[#allocation7 + $0xf0] sm:$0xff]
    %v173 = vld [vmem:[#allocation7 + $0xf8] sm:$0xff]
    %v174 = vld [vmem:[#allocation7 + $0x100] sm:$0xff]
    %v175 = vld [vmem:[#allocation7 + $0x108] sm:$0xff]
    %v176 = vld [vmem:[#allocation7 + $0x110] sm:$0xff]
    %v177 = vld [vmem:[#allocation7 + $0x118] sm:$0xff]
    %v178 = vld [vmem:[#allocation7 + $0x120] sm:$0xff]
    %v179 = vld [vmem:[#allocation7 + $0x128] sm:$0xff]
    %v180 = vld [vmem:[#allocation7 + $0x130] sm:$0xff]
    %v181 = vld [vmem:[#allocation7 + $0x138] sm:$0xff]
    %v182 = vld [vmem:[#allocation7 + $0x140] sm:$0xff]
    %v183 = vld [vmem:[#allocation7 + $0x148] sm:$0xff]
    %v184 = vld [vmem:[#allocation7 + $0x150] sm:$0xff]
    %v185 = vld [vmem:[#allocation7 + $0x158] sm:$0xff]
    %v186 = vld [vmem:[#allocation7 + $0x160] sm:$0xff]
    %v187 = vld [vmem:[#allocation7 + $0x168] sm:$0xff]
    %v188 = vld [vmem:[#allocation7 + $0x170] sm:$0xff]
    %v189 = vld [vmem:[#allocation7 + $0x178] sm:$0xff]
    %v190 = vld [vmem:[#allocation7 + $0x180] sm:$0xff]
    %v191 = vld [vmem:[#allocation7 + $0x188] sm:$0xff]
    %v192 = vld [vmem:[#allocation7 + $0x190] sm:$0xff]
    %v193 = vld [vmem:[#allocation7 + $0x198] sm:$0xff]
    %v194 = vld [vmem:[#allocation7 + $0x1a0] sm:$0xff]
    %v195 = vld [vmem:[#allocation7 + $0x1a8] sm:$0xff]
    %v196 = vld [vmem:[#allocation7 + $0x1b0] sm:$0xff]
    %v197 = vld [vmem:[#allocation7 + $0x1b8] sm:$0xff]
    %v198 = vld [vmem:[#allocation7 + $0x1c0] sm:$0xff]
    %v199 = vld [vmem:[#allocation7 + $0x1c8] sm:$0xff]
    %v200 = vld [vmem:[#allocation7 + $0x1d0] sm:$0xff]
    %v201 = vld [vmem:[#allocation7 + $0x1d8] sm:$0xff]
    %v202 = vld [vmem:[#allocation7 + $0x1e0] sm:$0xff]
    %v203 = vld [vmem:[#allocation7 + $0x1e8] sm:$0xff]
    %v204 = vld [vmem:[#allocation7 + $0x1f0] sm:$0xff]
    %v205 = vld [vmem:[#allocation7 + $0x1f8] sm:$0xff]
    %v206 = vpack.c.bf16 %v74, %v74
    %v207 = vpack.c.bf16 %v75, %v75
    %v208 = vpack.c.bf16 %v76, %v76
    %v209 = vpack.c.bf16 %v77, %v77
    %v210 = vpack.c.bf16 %v79, %v78
    %v211 = vpack.c.bf16 %v81, %v80
    %v212 = vpack.c.bf16 %v83, %v82
    %v213 = vpack.c.bf16 %v85, %v84
    %v214 = vpack.c.bf16 %v87, %v86
    %v215 = vpack.c.bf16 %v89, %v88
    %v216 = vpack.c.bf16 %v91, %v90
    %v217 = vpack.c.bf16 %v93, %v92
    %v218 = vpack.c.bf16 %v95, %v94
    %v219 = vpack.c.bf16 %v97, %v96
    %v220 = vpack.c.bf16 %v99, %v98
    %v221 = vpack.c.bf16 %v101, %v100
    %v222 = vpack.c.bf16 %v103, %v102
    %v223 = vpack.c.bf16 %v105, %v104
    %v224 = vpack.c.bf16 %v107, %v106
    %v225 = vpack.c.bf16 %v109, %v108
    %v226 = vpack.c.bf16 %v111, %v110
    %v227 = vpack.c.bf16 %v113, %v112
    %v228 = vpack.c.bf16 %v115, %v114
    %v229 = vpack.c.bf16 %v117, %v116
    %v230 = vpack.c.bf16 %v119, %v118
    %v231 = vpack.c.bf16 %v121, %v120
    %v232 = vpack.c.bf16 %v123, %v122
    %v233 = vpack.c.bf16 %v125, %v124
    %v234 = vpack.c.bf16 %v127, %v126
    %v235 = vpack.c.bf16 %v129, %v128
    %v236 = vpack.c.bf16 %v131, %v130
    %v237 = vpack.c.bf16 %v133, %v132
    %v238 = vpack.c.bf16 %v135, %v134
    %v239 = vpack.c.bf16 %v137, %v136
    %v240 = vpack.c.bf16 %v139, %v138
    %v241 = vpack.c.bf16 %v141, %v140
    %242 = vmatprep.subr.bf16.mxu0 0
    %243 = vmatpush1.bf16.xpose.msra.mxu0 %v210
    %244 = vmatprep.subr.bf16.mxu0 0
    %245 = vmatpush1.bf16.xpose.msra.mxu0 %v211
    %246 = vmatprep.subr.bf16.mxu0 0
    %247 = vmatpush1.bf16.xpose.msra.mxu0 %v212
    %248 = vmatprep.subr.bf16.mxu0 0
    %249 = vmatpush1.bf16.xpose.msra.mxu0 %v213
    %250 = vmatprep.subr.bf16.mxu0 0
    %251 = vmatpush1.bf16.xpose.msra.mxu0 %v214
    %252 = vmatprep.subr.bf16.mxu0 0
    %253 = vmatpush1.bf16.xpose.msra.mxu0 %v215
    %254 = vmatprep.subr.bf16.mxu0 0
    %255 = vmatpush1.bf16.xpose.msra.mxu0 %v216
    %256 = vmatprep.subr.bf16.mxu0 0
    %257 = vmatpush1.bf16.xpose.msra.mxu0 %v217
    %258 = vmatprep.subr.bf16.mxu0 0
    %259 = vmatpush1.bf16.xpose.msra.mxu0 0
    %260 = vmatprep.subr.bf16.mxu0 0
    %261 = vmatpush1.bf16.xpose.msra.mxu0 0
    %262 = vmatprep.subr.bf16.mxu0 0
    %263 = vmatpush1.bf16.xpose.msra.mxu0 0
    %264 = vmatprep.subr.bf16.mxu0 0
    %265 = vmatpush1.bf16.xpose.msra.mxu0 0
    %266 = vmatprep.subr.bf16.mxu0 0
    %267 = vmatpush1.bf16.xpose.msra.mxu0 0
    %268 = vmatprep.subr.bf16.mxu0 0
    %269 = vmatpush1.bf16.xpose.msra.mxu0 0
    %270 = vmatprep.subr.bf16.mxu0 0
    %271 = vmatpush1.bf16.xpose.msra.mxu0 0
    %272 = vmatprep.subr.bf16.mxu0 0
    %273 = vmatpush1.bf16.xpose.msra.mxu0 0
    %274 = vmatprep.mubr.bf16.mxu0 0
    %275 = vmatmul.mubr.bf16.gmra.mrb[0].mxu0 %v206
    %v276 = vpop.f32.mrb[0].mxu0
    %v277 = vadd.f32 0.0, %v276
    %v278 = vpop.f32.mrb[0].mxu0
    %v279 = vpop.f32.mrb[0].mxu0
    %v280 = vpop.f32.mrb[0].mxu0
    %281 = vdwg.mxu0
    %282 = vmatprep.subr.bf16.mxu0 0
    %283 = vmatpush1.bf16.xpose.msra.mxu0 %v218
    %284 = vmatprep.subr.bf16.mxu0 0
    %285 = vmatpush1.bf16.xpose.msra.mxu0 %v219
    %286 = vmatprep.subr.bf16.mxu0 0
    %287 = vmatpush1.bf16.xpose.msra.mxu0 %v220
    %288 = vmatprep.subr.bf16.mxu0 0
    %289 = vmatpush1.bf16.xpose.msra.mxu0 %v221
    %290 = vmatprep.subr.bf16.mxu0 0
    %291 = vmatpush1.bf16.xpose.msra.mxu0 %v222
    %292 = vmatprep.subr.bf16.mxu0 0
    %293 = vmatpush1.bf16.xpose.msra.mxu0 %v223
    %294 = vmatprep.subr.bf16.mxu0 0
    %295 = vmatpush1.bf16.xpose.msra.mxu0 %v224
    %296 = vmatprep.subr.bf16.mxu0 0
    %297 = vmatpush1.bf16.xpose.msra.mxu0 %v225
    %298 = vmatprep.subr.bf16.mxu0 0
    %299 = vmatpush1.bf16.xpose.msra.mxu0 0
    %300 = vmatprep.subr.bf16.mxu0 0
    %301 = vmatpush1.bf16.xpose.msra.mxu0 0
    %302 = vmatprep.subr.bf16.mxu0 0
    %303 = vmatpush1.bf16.xpose.msra.mxu0 0
    %304 = vmatprep.subr.bf16.mxu0 0
    %305 = vmatpush1.bf16.xpose.msra.mxu0 0
    %306 = vmatprep.subr.bf16.mxu0 0
    %307 = vmatpush1.bf16.xpose.msra.mxu0 0
    %308 = vmatprep.subr.bf16.mxu0 0
    %309 = vmatpush1.bf16.xpose.msra.mxu0 0
    %310 = vmatprep.subr.bf16.mxu0 0
    %311 = vmatpush1.bf16.xpose.msra.mxu0 0
    %312 = vmatprep.subr.bf16.mxu0 0
    %313 = vmatpush1.bf16.xpose.msra.mxu0 0
    %314 = vmatprep.mubr.bf16.mxu0 0
    %315 = vmatmul.mubr.bf16.gmra.mrb[0].mxu0 %v207
    %v316 = vpop.f32.mrb[0].mxu0
    %v317 = vadd.f32 0.0, %v316
    %v318 = vpop.f32.mrb[0].mxu0
    %v319 = vpop.f32.mrb[0].mxu0
    %v320 = vpop.f32.mrb[0].mxu0
    %321 = vdwg.mxu0
    %322 = vmatprep.subr.bf16.mxu0 0
    %323 = vmatpush1.bf16.xpose.msra.mxu0 %v226
    %324 = vmatprep.subr.bf16.mxu0 0
    %325 = vmatpush1.bf16.xpose.msra.mxu0 %v227
    %326 = vmatprep.subr.bf16.mxu0 0
    %327 = vmatpush1.bf16.xpose.msra.mxu0 %v228
    %328 = vmatprep.subr.bf16.mxu0 0
    %329 = vmatpush1.bf16.xpose.msra.mxu0 %v229
    %330 = vmatprep.subr.bf16.mxu0 0
    %331 = vmatpush1.bf16.xpose.msra.mxu0 %v230
    %332 = vmatprep.subr.bf16.mxu0 0
    %333 = vmatpush1.bf16.xpose.msra.mxu0 %v231
    %334 = vmatprep.subr.bf16.mxu0 0
    %335 = vmatpush1.bf16.xpose.msra.mxu0 %v232
    %336 = vmatprep.subr.bf16.mxu0 0
    %337 = vmatpush1.bf16.xpose.msra.mxu0 %v233
    %338 = vmatprep.subr.bf16.mxu0 0
    %339 = vmatpush1.bf16.xpose.msra.mxu0 0
    %340 = vmatprep.subr.bf16.mxu0 0
    %341 = vmatpush1.bf16.xpose.msra.mxu0 0
    %342 = vmatprep.subr.bf16.mxu0 0
    %343 = vmatpush1.bf16.xpose.msra.mxu0 0
    %344 = vmatprep.subr.bf16.mxu0 0
    %345 = vmatpush1.bf16.xpose.msra.mxu0 0
    %346 = vmatprep.subr.bf16.mxu0 0
    %347 = vmatpush1.bf16.xpose.msra.mxu0 0
    %348 = vmatprep.subr.bf16.mxu0 0
    %349 = vmatpush1.bf16.xpose.msra.mxu0 0
    %350 = vmatprep.subr.bf16.mxu0 0
    %351 = vmatpush1.bf16.xpose.msra.mxu0 0
    %352 = vmatprep.subr.bf16.mxu0 0
    %353 = vmatpush1.bf16.xpose.msra.mxu0 0
    %354 = vmatprep.mubr.bf16.mxu0 0
    %355 = vmatmul.mubr.bf16.gmra.mrb[0].mxu0 %v208
    %v356 = vpop.f32.mrb[0].mxu0
    %v357 = vadd.f32 0.0, %v356
    %v358 = vpop.f32.mrb[0].mxu0
    %v359 = vpop.f32.mrb[0].mxu0
    %v360 = vpop.f32.mrb[0].mxu0
    %361 = vdwg.mxu0
    %362 = vmatprep.subr.bf16.mxu0 0
    %363 = vmatpush1.bf16.xpose.msra.mxu0 %v234
    %364 = vmatprep.subr.bf16.mxu0 0
    %365 = vmatpush1.bf16.xpose.msra.mxu0 %v235
    %366 = vmatprep.subr.bf16.mxu0 0
    %367 = vmatpush1.bf16.xpose.msra.mxu0 %v236
    %368 = vmatprep.subr.bf16.mxu0 0
    %369 = vmatpush1.bf16.xpose.msra.mxu0 %v237
    %370 = vmatprep.subr.bf16.mxu0 0
    %371 = vmatpush1.bf16.xpose.msra.mxu0 %v238
    %372 = vmatprep.subr.bf16.mxu0 0
    %373 = vmatpush1.bf16.xpose.msra.mxu0 %v239
    %374 = vmatprep.subr.bf16.mxu0 0
    %375 = vmatpush1.bf16.xpose.msra.mxu0 %v240
    %376 = vmatprep.subr.bf16.mxu0 0
    %377 = vmatpush1.bf16.xpose.msra.mxu0 %v241
    %378 = vmatprep.subr.bf16.mxu0 0
    %379 = vmatpush1.bf16.xpose.msra.mxu0 0
    %380 = vmatprep.subr.bf16.mxu0 0
    %381 = vmatpush1.bf16.xpose.msra.mxu0 0
    %382 = vmatprep.subr.bf16.mxu0 0
    %383 = vmatpush1.bf16.xpose.msra.mxu0 0
    %384 = vmatprep.subr.bf16.mxu0 0
    %385 = vmatpush1.bf16.xpose.msra.mxu0 0
    %386 = vmatprep.subr.bf16.mxu0 0
    %387 = vmatpush1.bf16.xpose.msra.mxu0 0
    %388 = vmatprep.subr.bf16.mxu0 0
    %389 = vmatpush1.bf16.xpose.msra.mxu0 0
    %390 = vmatprep.subr.bf16.mxu0 0
    %391 = vmatpush1.bf16.xpose.msra.mxu0 0
    %392 = vmatprep.subr.bf16.mxu0 0
    %393 = vmatpush1.bf16.xpose.msra.mxu0 0
    %394 = vmatprep.mubr.bf16.mxu0 0
    %395 = vmatmul.mubr.bf16.gmra.mrb[0].mxu0 %v209
    %v396 = vpop.f32.mrb[0].mxu0
    %v397 = vadd.f32 0.0, %v396
    %v398 = vpop.f32.mrb[0].mxu0
    %v399 = vpop.f32.mrb[0].mxu0
    %v400 = vpop.f32.mrb[0].mxu0
    %401 = vdwg.mxu0
    %402 = vmax.xlane.f32.xlu0 %v277
    %v403 = vpop.xlane.xlu0 %402
    %404 = vmax.xlane.f32.xlu0 %v317
    %v405 = vpop.xlane.xlu0 %404
    %406 = vmax.xlane.f32.xlu0 %v357
    %v407 = vpop.xlane.xlu0 %406
    %408 = vmax.xlane.f32.xlu0 %v397
    %v409 = vpop.xlane.xlu0 %408
    %v410 = vsub.f32 %v277, %v403
    %v411 = vsub.f32 %v317, %v405
    %v412 = vsub.f32 %v357, %v407
    %v413 = vsub.f32 %v397, %v409
    %v414 = vmul.f32 %v410, 1.442695
    %v415 = vpow.pop %v414
    %v416 = vmul.f32 %v411, 1.442695
    %v417 = vpow.pop %v416
    %v418 = vmul.f32 %v412, 1.442695
    %v419 = vpow.pop %v418
    %v420 = vmul.f32 %v413, 1.442695
    %v421 = vpow.pop %v420
    %422 = vadd.xlane.f32.xlu0 %v415
    %v423 = vpop.xlane.xlu0 %422
    %424 = vadd.xlane.f32.xlu0 %v417
    %v425 = vpop.xlane.xlu0 %424
    %426 = vadd.xlane.f32.xlu0 %v419
    %v427 = vpop.xlane.xlu0 %426
    %428 = vadd.xlane.f32.xlu0 %v421
    %v429 = vpop.xlane.xlu0 %428
    %v430 = vrcp.pop %v423
    %v431 = vmul.f32 4.0, %v430
    %v432 = vrcp.pop %v425
    %v433 = vmul.f32 4.0, %v432
    %v434 = vrcp.pop %v427
    %v435 = vmul.f32 4.0, %v434
    %v436 = vrcp.pop %v429
    %v437 = vmul.f32 4.0, %v436
    %v438 = vld [vmem:[#allocation8] sm:$0xff]
    %v439 = vld [vmem:[#allocation8 + $0x8] sm:$0xff]
    %v440 = vld [vmem:[#allocation8 + $0x10] sm:$0xff]
    %v441 = vld [vmem:[#allocation8 + $0x18] sm:$0xff]
    %vm442 = vcmp.ge.f32.partialorder %v438, 0.5
    %vm443 = vcmp.ge.f32.partialorder %v439, 0.5
    %vm444 = vcmp.ge.f32.partialorder %v440, 0.5
    %vm445 = vcmp.ge.f32.partialorder %v441, 0.5
    %v446 = vmul.f32 %v415, %v431
    %v447 = vmul.f32 %v417, %v433
    %v448 = vmul.f32 %v419, %v435
    %v449 = vmul.f32 %v421, %v437
    %v450 = vsel %vm442, %v446, 0.0
    %v451 = vsel %vm443, %v447, 0.0
    %v452 = vsel %vm444, %v448, 0.0
    %v453 = vsel %vm445, %v449, 0.0
    %v454 = vpack.c.bf16 %v450, %v450
    %v455 = vpack.c.bf16 %v451, %v451
    %v456 = vpack.c.bf16 %v452, %v452
    %v457 = vpack.c.bf16 %v453, %v453
    %v458 = vpack.c.bf16 %v143, %v142
    %v459 = vpack.c.bf16 %v145, %v144
    %v460 = vpack.c.bf16 %v147, %v146
    %v461 = vpack.c.bf16 %v149, %v148
    %v462 = vpack.c.bf16 %v151, %v150
    %v463 = vpack.c.bf16 %v153, %v152
    %v464 = vpack.c.bf16 %v155, %v154
    %v465 = vpack.c.bf16 %v157, %v156
    %v466 = vpack.c.bf16 %v159, %v158
    %v467 = vpack.c.bf16 %v161, %v160
    %v468 = vpack.c.bf16 %v163, %v162
    %v469 = vpack.c.bf16 %v165, %v164
    %v470 = vpack.c.bf16 %v167, %v166
    %v471 = vpack.c.bf16 %v169, %v168
    %v472 = vpack.c.bf16 %v171, %v170
    %v473 = vpack.c.bf16 %v173, %v172
    %v474 = vpack.c.bf16 %v175, %v174
    %v475 = vpack.c.bf16 %v177, %v176
    %v476 = vpack.c.bf16 %v179, %v178
    %v477 = vpack.c.bf16 %v181, %v180
    %v478 = vpack.c.bf16 %v183, %v182
    %v479 = vpack.c.bf16 %v185, %v184
    %v480 = vpack.c.bf16 %v187, %v186
    %v481 = vpack.c.bf16 %v189, %v188
    %v482 = vpack.c.bf16 %v191, %v190
    %v483 = vpack.c.bf16 %v193, %v192
    %v484 = vpack.c.bf16 %v195, %v194
    %v485 = vpack.c.bf16 %v197, %v196
    %v486 = vpack.c.bf16 %v199, %v198
    %v487 = vpack.c.bf16 %v201, %v200
    %v488 = vpack.c.bf16 %v203, %v202
    %v489 = vpack.c.bf16 %v205, %v204
    %490 = vmatprep.subr.bf16.mxu0 0
    %491 = vmatpush1.bf16.msra.mxu0 %v458
    %492 = vmatprep.subr.bf16.mxu0 0
    %493 = vmatpush1.bf16.msra.mxu0 %v459
    %494 = vmatprep.subr.bf16.mxu0 0
    %495 = vmatpush1.bf16.msra.mxu0 %v460
    %496 = vmatprep.subr.bf16.mxu0 0
    %497 = vmatpush1.bf16.msra.mxu0 %v461
    %498 = vmatprep.subr.bf16.mxu0 0
    %499 = vmatpush1.bf16.msra.mxu0 %v462
    %500 = vmatprep.subr.bf16.mxu0 0
    %501 = vmatpush1.bf16.msra.mxu0 %v463
    %502 = vmatprep.subr.bf16.mxu0 0
    %503 = vmatpush1.bf16.msra.mxu0 %v464
    %504 = vmatprep.subr.bf16.mxu0 0
    %505 = vmatpush1.bf16.msra.mxu0 %v465
    %506 = vmatprep.subr.bf16.mxu0 0
    %507 = vmatpush1.bf16.msra.mxu0 0
    %508 = vmatprep.subr.bf16.mxu0 0
    %509 = vmatpush1.bf16.msra.mxu0 0
    %510 = vmatprep.subr.bf16.mxu0 0
    %511 = vmatpush1.bf16.msra.mxu0 0
    %512 = vmatprep.subr.bf16.mxu0 0
    %513 = vmatpush1.bf16.msra.mxu0 0
    %514 = vmatprep.subr.bf16.mxu0 0
    %515 = vmatpush1.bf16.msra.mxu0 0
    %516 = vmatprep.subr.bf16.mxu0 0
    %517 = vmatpush1.bf16.msra.mxu0 0
    %518 = vmatprep.subr.bf16.mxu0 0
    %519 = vmatpush1.bf16.msra.mxu0 0
    %520 = vmatprep.subr.bf16.mxu0 0
    %521 = vmatpush1.bf16.msra.mxu0 0
    %522 = vmatprep.mubr.bf16.mxu0 0
    %523 = vmatmul.mubr.bf16.gmra.mrb[0].mxu0 %v454
    %v524 = vpop.f32.mrb[0].mxu0
    %v525 = vadd.f32 0.0, %v524
    %v526 = vpop.f32.mrb[0].mxu0
    %v527 = vpop.f32.mrb[0].mxu0
    %v528 = vpop.f32.mrb[0].mxu0
    %529 = vdwg.mxu0
    %530 = vmatprep.subr.bf16.mxu0 0
    %531 = vmatpush1.bf16.msra.mxu0 %v466
    %532 = vmatprep.subr.bf16.mxu0 0
    %533 = vmatpush1.bf16.msra.mxu0 %v467
    %534 = vmatprep.subr.bf16.mxu0 0
    %535 = vmatpush1.bf16.msra.mxu0 %v468
    %536 = vmatprep.subr.bf16.mxu0 0
    %537 = vmatpush1.bf16.msra.mxu0 %v469
    %538 = vmatprep.subr.bf16.mxu0 0
    %539 = vmatpush1.bf16.msra.mxu0 %v470
    %540 = vmatprep.subr.bf16.mxu0 0
    %541 = vmatpush1.bf16.msra.mxu0 %v471
    %542 = vmatprep.subr.bf16.mxu0 0
    %543 = vmatpush1.bf16.msra.mxu0 %v472
    %544 = vmatprep.subr.bf16.mxu0 0
    %545 = vmatpush1.bf16.msra.mxu0 %v473
    %546 = vmatprep.subr.bf16.mxu0 0
    %547 = vmatpush1.bf16.msra.mxu0 0
    %548 = vmatprep.subr.bf16.mxu0 0
    %549 = vmatpush1.bf16.msra.mxu0 0
    %550 = vmatprep.subr.bf16.mxu0 0
    %551 = vmatpush1.bf16.msra.mxu0 0
    %552 = vmatprep.subr.bf16.mxu0 0
    %553 = vmatpush1.bf16.msra.mxu0 0
    %554 = vmatprep.subr.bf16.mxu0 0
    %555 = vmatpush1.bf16.msra.mxu0 0
    %556 = vmatprep.subr.bf16.mxu0 0
    %557 = vmatpush1.bf16.msra.mxu0 0
    %558 = vmatprep.subr.bf16.mxu0 0
    %559 = vmatpush1.bf16.msra.mxu0 0
    %560 = vmatprep.subr.bf16.mxu0 0
    %561 = vmatpush1.bf16.msra.mxu0 0
    %562 = vmatprep.mubr.bf16.mxu0 0
    %563 = vmatmul.mubr.bf16.gmra.mrb[0].mxu0 %v455
    %v564 = vpop.f32.mrb[0].mxu0
    %v565 = vadd.f32 0.0, %v564
    %v566 = vpop.f32.mrb[0].mxu0
    %v567 = vpop.f32.mrb[0].mxu0
    %v568 = vpop.f32.mrb[0].mxu0
    %569 = vdwg.mxu0
    %570 = vmatprep.subr.bf16.mxu0 0
    %571 = vmatpush1.bf16.msra.mxu0 %v474
    %572 = vmatprep.subr.bf16.mxu0 0
    %573 = vmatpush1.bf16.msra.mxu0 %v475
    %574 = vmatprep.subr.bf16.mxu0 0
    %575 = vmatpush1.bf16.msra.mxu0 %v476
    %576 = vmatprep.subr.bf16.mxu0 0
    %577 = vmatpush1.bf16.msra.mxu0 %v477
    %578 = vmatprep.subr.bf16.mxu0 0
    %579 = vmatpush1.bf16.msra.mxu0 %v478
    %580 = vmatprep.subr.bf16.mxu0 0
    %581 = vmatpush1.bf16.msra.mxu0 %v479
    %582 = vmatprep.subr.bf16.mxu0 0
    %583 = vmatpush1.bf16.msra.mxu0 %v480
    %584 = vmatprep.subr.bf16.mxu0 0
    %585 = vmatpush1.bf16.msra.mxu0 %v481
    %586 = vmatprep.subr.bf16.mxu0 0
    %587 = vmatpush1.bf16.msra.mxu0 0
    %588 = vmatprep.subr.bf16.mxu0 0
    %589 = vmatpush1.bf16.msra.mxu0 0
    %590 = vmatprep.subr.bf16.mxu0 0
    %591 = vmatpush1.bf16.msra.mxu0 0
    %592 = vmatprep.subr.bf16.mxu0 0
    %593 = vmatpush1.bf16.msra.mxu0 0
    %594 = vmatprep.subr.bf16.mxu0 0
    %595 = vmatpush1.bf16.msra.mxu0 0
    %596 = vmatprep.subr.bf16.mxu0 0
    %597 = vmatpush1.bf16.msra.mxu0 0
    %598 = vmatprep.subr.bf16.mxu0 0
    %599 = vmatpush1.bf16.msra.mxu0 0
    %600 = vmatprep.subr.bf16.mxu0 0
    %601 = vmatpush1.bf16.msra.mxu0 0
    %602 = vmatprep.mubr.bf16.mxu0 0
    %603 = vmatmul.mubr.bf16.gmra.mrb[0].mxu0 %v456
    %v604 = vpop.f32.mrb[0].mxu0
    %v605 = vadd.f32 0.0, %v604
    %v606 = vpop.f32.mrb[0].mxu0
    %v607 = vpop.f32.mrb[0].mxu0
    %v608 = vpop.f32.mrb[0].mxu0
    %609 = vdwg.mxu0
    %610 = vmatprep.subr.bf16.mxu0 0
    %611 = vmatpush1.bf16.msra.mxu0 %v482
    %612 = vmatprep.subr.bf16.mxu0 0
    %613 = vmatpush1.bf16.msra.mxu0 %v483
    %614 = vmatprep.subr.bf16.mxu0 0
    %615 = vmatpush1.bf16.msra.mxu0 %v484
    %616 = vmatprep.subr.bf16.mxu0 0
    %617 = vmatpush1.bf16.msra.mxu0 %v485
    %618 = vmatprep.subr.bf16.mxu0 0
    %619 = vmatpush1.bf16.msra.mxu0 %v486
    %620 = vmatprep.subr.bf16.mxu0 0
    %621 = vmatpush1.bf16.msra.mxu0 %v487
    %622 = vmatprep.subr.bf16.mxu0 0
    %623 = vmatpush1.bf16.msra.mxu0 %v488
    %624 = vmatprep.subr.bf16.mxu0 0
    %625 = vmatpush1.bf16.msra.mxu0 %v489
    %626 = vmatprep.subr.bf16.mxu0 0
    %627 = vmatpush1.bf16.msra.mxu0 0
    %628 = vmatprep.subr.bf16.mxu0 0
    %629 = vmatpush1.bf16.msra.mxu0 0
    %630 = vmatprep.subr.bf16.mxu0 0
    %631 = vmatpush1.bf16.msra.mxu0 0
    %632 = vmatprep.subr.bf16.mxu0 0
    %633 = vmatpush1.bf16.msra.mxu0 0
    %634 = vmatprep.subr.bf16.mxu0 0
    %635 = vmatpush1.bf16.msra.mxu0 0
    %636 = vmatprep.subr.bf16.mxu0 0
    %637 = vmatpush1.bf16.msra.mxu0 0
    %638 = vmatprep.subr.bf16.mxu0 0
    %639 = vmatpush1.bf16.msra.mxu0 0
    %640 = vmatprep.subr.bf16.mxu0 0
    %641 = vmatpush1.bf16.msra.mxu0 0
    %642 = vmatprep.mubr.bf16.mxu0 0
    %643 = vmatmul.mubr.bf16.gmra.mrb[0].mxu0 %v457
    %v644 = vpop.f32.mrb[0].mxu0
    %v645 = vadd.f32 0.0, %v644
    %v646 = vpop.f32.mrb[0].mxu0
    %v647 = vpop.f32.mrb[0].mxu0
    %v648 = vpop.f32.mrb[0].mxu0
    %649 = vdwg.mxu0
    %650 = vst [vmem:[#allocation10] sm:$0xff] %v525
    %651 = vst [vmem:[#allocation10 + $0x8] sm:$0xff] %v565
    %652 = vst [vmem:[#allocation10 + $0x10] sm:$0xff] %v605
    %653 = vst [vmem:[#allocation10 + $0x18] sm:$0xff] %v645
    // Predicated region
    $region34: #{tpu_custom_call.1} parent=1 // pred_check
      _
    $region35: #{tpu_custom_call.1} parent=1 // pred_check_branch
      %655 = sbr.rel (0) target = $region37
    $region36: #{tpu_custom_call.1} parent=1 // pred_region
      %s657 = ssub.s32 512, 512
      %658 = vsyncadd [#allocation4], %s657
      %s659 = sshll.u32 [#allocation10], 4
      %s660 = int_to_ptr.vmem [resolvable:$true] %s659
      %665 = dma.vmem_to_hbm [thread:$0]  %s660, 512, %s4, [#allocation4], 128, 128, 8
    $region37: #{tpu_custom_call.1} parent=1 // pred_fallthru
      _
    // Predicated region
    $region38: #{tpu_custom_call.1} parent=1 // pred_check
      _
    $region39: #{tpu_custom_call.1} parent=1 // pred_check_branch
      %667 = sbr.rel (0) target = $region41
    $region40: #{tpu_custom_call.1} parent=1 // pred_region
      %668 = dma.done [#allocation4], 512
    $region41: #{tpu_custom_call.1} parent=1 // pred_fallthru
      _
    %669 = vsyncpa [#allocation3], 1
    %670 = vsyncpa [#allocation6], 1
    %671 = vsyncpa [#allocation9], 1
    %672 = vsyncpa [#allocation4], 1

</llo_original>
